<compile_context>
chip_gen: v6e
topology: v6e:2x2x1
jax: 0.10.0
libtpu: 0.0.40
codegen_flags: <defaults>
</compile_context>

<pallas_src>
import jax
import jax.numpy as jnp
from jax.experimental import pallas as pl
from jax.experimental.pallas import tpu as pltpu


def _svd_lstm_seq_kernel(x_ref, ux_ref, uh_ref, v_ref, b_ref, h0_ref, c0_ref,
                         hc_ref, h_sc, c_sc):
    """One LSTM time step. Grid = (batch_tile, t); t is the minor, sequential axis."""
    t = pl.program_id(1)
    H = c_sc.shape[1]

    # Load the carried state at the start of each batch tile's time scan.
    @pl.when(t == 0)
    def _():
        h_sc[...] = h0_ref[...]
        c_sc[...] = c0_ref[...]

    x_t = x_ref[0]                      # (TB, I)  bf16
    h_prev = h_sc[...]                  # (TB, H)  f32 (carried)
    c_prev = c_sc[...]                  # (TB, H)  f32 (carried)

    # Low-rank projection: y = x @ U_x + h @ U_h        (MXU, f32 accumulate).
    y = (jnp.dot(x_t, ux_ref[...], preferred_element_type=jnp.float32)
         + jnp.dot(h_prev.astype(jnp.bfloat16), uh_ref[...],
                   preferred_element_type=jnp.float32))

    # gates = y @ (|Singular| * V) + bias               -> (TB, 4H), f32.
    gates = jnp.dot(y.astype(jnp.bfloat16), v_ref[...],
                    preferred_element_type=jnp.float32) + b_ref[...]

    # Full-tile activation selected by a lane mask.
    # Gate order (PyTorch chunk(4, dim=1)): [in, remember, cell, out].
    lane = jax.lax.broadcasted_iota(jnp.int32, gates.shape, dimension=1)
    is_cell_gate = (lane >= 2 * H) & (lane < 3 * H)
    act = jnp.where(is_cell_gate, jnp.tanh(gates), jax.nn.sigmoid(gates))

    in_gate = act[:, 0 * H:1 * H]
    remember_gate = act[:, 1 * H:2 * H]
    cell_gate = act[:, 2 * H:3 * H]
    out_gate = act[:, 3 * H:4 * H]

    cell = remember_gate * c_prev + in_gate * cell_gate
    hidden = out_gate * jnp.tanh(cell)

    # Carry state in VMEM and emit one lane-merged (TB, 2H) slab per step.
    h_sc[...] = hidden
    c_sc[...] = cell
    hc_ref[0] = jnp.concatenate([hidden, cell], axis=-1)


def svd_lstm_sequence(x_seq, h0, c0, U, Singular, V, bias):
    """Run the SVD_LSTMCell over a whole sequence in one pallas_call.

    x_seq: (T, B, I); h0, c0: (B, H); U: (I+H, r); Singular: (r,);
    V: (r, 4H); bias: (4H,).
    Returns (h_seq, c_seq), each (T, B, H) float32.
    """
    T, B, I = x_seq.shape
    H = c0.shape[-1]
    D, r = U.shape
    G = V.shape[-1]
    assert D == I + H and G == 4 * H

    # ---- one-time parameter prep (amortized over the whole sequence) ------
    U_x = U[:I].astype(jnp.bfloat16)                               # (I, r)
    U_h = U[I:].astype(jnp.bfloat16)                               # (H, r)
    V_s = (jnp.abs(Singular)[:, None] * V).astype(jnp.bfloat16)    # (r, 4H)
    b2 = bias.reshape(1, G).astype(jnp.float32)
    x_bf = x_seq.astype(jnp.bfloat16)
    h0 = h0.astype(jnp.float32)
    c0 = c0.astype(jnp.float32)

    TB = B              # whole batch per tile at these sizes; tile if B grows
    NB = B // TB

    hc = pl.pallas_call(
        _svd_lstm_seq_kernel,
        out_shape=jax.ShapeDtypeStruct((T, B, 2 * H), jnp.float32),
        grid_spec=pltpu.PrefetchScalarGridSpec(
            num_scalar_prefetch=0,
            grid=(NB, T),
            in_specs=[
                pl.BlockSpec((1, TB, I), lambda b, t: (t, b, 0)),   # x_t (per step)
                pl.BlockSpec((I, r), lambda b, t: (0, 0)),          # U_x (resident)
                pl.BlockSpec((H, r), lambda b, t: (0, 0)),          # U_h (resident)
                pl.BlockSpec((r, G), lambda b, t: (0, 0)),          # |S|*V (resident)
                pl.BlockSpec((1, G), lambda b, t: (0, 0)),          # bias (resident)
                pl.BlockSpec((TB, H), lambda b, t: (b, 0)),         # h0
                pl.BlockSpec((TB, H), lambda b, t: (b, 0)),         # c0
            ],
            out_specs=pl.BlockSpec((1, TB, 2 * H), lambda b, t: (t, b, 0)),
            scratch_shapes=[pltpu.VMEM((TB, H), jnp.float32),       # h carry
                            pltpu.VMEM((TB, H), jnp.float32)],      # c carry
        ),
        compiler_params=pltpu.CompilerParams(
            dimension_semantics=("parallel", "arbitrary")),
    )(x_bf, U_x, U_h, V_s, b2, h0, c0)

    return hc[..., :H], hc[..., H:]


def svd_lstm_cell(x, h_prev, c_prev, U, Singular, V, bias):
    """Single-step API matching the PyTorch module forward. Returns (hidden, cell)."""
    h_seq, c_seq = svd_lstm_sequence(x[None], h_prev, c_prev, U, Singular, V, bias)
    return h_seq[0], c_seq[0]


def init_params(key, input_size, hidden_size, rank=None):
    """Deterministic parameter init mirroring SVD_Linear.__init__ shapes."""
    in_dim = input_size + hidden_size
    out_dim = 4 * hidden_size
    r = min(in_dim, out_dim) if (rank is None or rank >= min(in_dim, out_dim)) else rank

    ku, kv, ks = jax.random.split(key, 3)
    # xavier_normal_ : std = sqrt(2 / (fan_in + fan_out))
    std_u = (2.0 / (in_dim + r)) ** 0.5
    std_v = (2.0 / (r + out_dim)) ** 0.5
    U = std_u * jax.random.normal(ku, (in_dim, r), dtype=jnp.float32)
    V = std_v * jax.random.normal(kv, (r, out_dim), dtype=jnp.float32)
    Singular = jax.random.uniform(ks, (r,), dtype=jnp.float32)      # U(0,1)
    bias = jnp.zeros((out_dim,), dtype=jnp.float32)                  # constant_(0.0)
    return U, Singular, V, bias


def reference_sequence(x_seq, h0, c0, U, Singular, V, bias,
                       match_kernel_precision=False):
    """Pure-JAX reference of the PyTorch forward, scanned over time.

    With match_kernel_precision=True it mirrors the kernel's bf16-weight /
    f32-accumulate scheme; otherwise it is the exact f32 PyTorch semantics.
    """
    I = x_seq.shape[-1]
    if match_kernel_precision:
        U_x = U[:I].astype(jnp.bfloat16)
        U_h = U[I:].astype(jnp.bfloat16)
        V_s = (jnp.abs(Singular)[:, None] * V).astype(jnp.bfloat16)
    else:
        U_x, U_h, V_s = U[:I], U[I:], jnp.abs(Singular)[:, None] * V

    def step(carry, x_t):
        h, c = carry
        if match_kernel_precision:
            y = (jnp.dot(x_t.astype(jnp.bfloat16), U_x,
                         preferred_element_type=jnp.float32)
                 + jnp.dot(h.astype(jnp.bfloat16), U_h,
                           preferred_element_type=jnp.float32))
            gates = jnp.dot(y.astype(jnp.bfloat16), V_s,
                            preferred_element_type=jnp.float32) + bias
        else:
            y = x_t @ U_x + h @ U_h
            gates = y @ V_s + bias
        i, r, g, o = jnp.split(gates, 4, axis=-1)
        i, r, o = jax.nn.sigmoid(i), jax.nn.sigmoid(r), jax.nn.sigmoid(o)
        g = jnp.tanh(g)
        c = r * c + i * g
        h = o * jnp.tanh(c)
        return (h, c), (h, c)

    _, (h_seq, c_seq) = jax.lax.scan(step, (h0, c0), x_seq)
    return h_seq, c_seq


if __name__ == "__main__":
    T, B, INPUT, HIDDEN = 16, 8, 32, 32

    key = jax.random.PRNGKey(0)
    kp, kx, kh, kc = jax.random.split(key, 4)

    U, Singular, V, bias = init_params(kp, INPUT, HIDDEN)
    x_seq = jax.random.normal(kx, (T, B, INPUT), dtype=jnp.float32)
    h0 = jax.random.normal(kh, (B, HIDDEN), dtype=jnp.float32)
    c0 = jax.random.normal(kc, (B, HIDDEN), dtype=jnp.float32)

    h_seq, c_seq = svd_lstm_sequence(x_seq, h0, c0, U, Singular, V, bias)
    jax.block_until_ready((h_seq, c_seq))

    # Tight check against a reference with matching bf16-weight / f32-accum
    # precision (verifies the kernel math exactly).
    h_m, c_m = reference_sequence(x_seq, h0, c0, U, Singular, V, bias, True)
    assert jnp.allclose(h_seq, h_m, atol=1e-3, rtol=1e-3)
    assert jnp.allclose(c_seq, c_m, atol=1e-3, rtol=1e-3)

    # Loose check against the exact f32 PyTorch semantics (bf16 weight rounding
    # accumulated over T recurrent steps).
    h_f, c_f = reference_sequence(x_seq, h0, c0, U, Singular, V, bias, False)
    assert jnp.allclose(h_seq, h_f, atol=5e-2, rtol=5e-2)
    assert jnp.allclose(c_seq, c_f, atol=5e-2, rtol=5e-2)

    # Single-step path with prev_state=None -> zeros, like the module.
    zeros = jnp.zeros((B, HIDDEN), jnp.float32)
    h1, c1 = svd_lstm_cell(x_seq[0], zeros, zeros, U, Singular, V, bias)
    jax.block_until_ready((h1, c1))

    print("KERNEL_OK")
</pallas_src>

<mosaic_0001>
module attributes {stable_mosaic.version = 11 : i64} {
  func.func @_svd_lstm_seq_kernel(%arg0: i32, %arg1: i32, %arg2: memref<1x8x32xbf16, #tpu.memory_space<vmem>>, %arg3: memref<32x64xbf16, #tpu.memory_space<vmem>>, %arg4: memref<32x64xbf16, #tpu.memory_space<vmem>>, %arg5: memref<64x128xbf16, #tpu.memory_space<vmem>>, %arg6: memref<1x128xf32, #tpu.memory_space<vmem>>, %arg7: memref<8x32xf32, #tpu.memory_space<vmem>>, %arg8: memref<8x32xf32, #tpu.memory_space<vmem>>, %arg9: memref<1x8x64xf32, #tpu.memory_space<vmem>>, %arg10: memref<8x32xf32, #tpu.memory_space<vmem>>, %arg11: memref<8x32xf32, #tpu.memory_space<vmem>>) attributes {dimension_semantics = [#tpu.dimension_semantics<parallel>, #tpu.dimension_semantics<arbitrary>], iteration_bounds = array<i64: 1, 16>, scalar_prefetch = 0 : i64, scratch_operands = 2 : i64, tpu.core_type = #tpu.core_type<tc>, window_params = [{transform_indices = @transform_0, window_bounds = array<i64: 1, 8, 32>}, {pipeline_mode = #tpu.pipeline_mode<synchronous>, transform_indices = @transform_1, window_bounds = array<i64: 32, 64>}, {pipeline_mode = #tpu.pipeline_mode<synchronous>, transform_indices = @transform_2, window_bounds = array<i64: 32, 64>}, {pipeline_mode = #tpu.pipeline_mode<synchronous>, transform_indices = @transform_3, window_bounds = array<i64: 64, 128>}, {pipeline_mode = #tpu.pipeline_mode<synchronous>, transform_indices = @transform_4, window_bounds = array<i64: 1, 128>}, {transform_indices = @transform_5, window_bounds = array<i64: 8, 32>}, {transform_indices = @transform_6, window_bounds = array<i64: 8, 32>}, {transform_indices = @transform_7, window_bounds = array<i64: 1, 8, 64>}]} {
    %c0_i32 = arith.constant 0 : i32
    %0 = arith.cmpi eq, %arg1, %c0_i32 : i32
    %1 = arith.extui %0 : i1 to i32
    %c0_i32_0 = arith.constant 0 : i32
    %2 = arith.cmpi ne, %1, %c0_i32_0 : i32
    scf.if %2 {
      %c0_25 = arith.constant 0 : index
      %c0_26 = arith.constant 0 : index
      %47 = vector.load %arg7[%c0_25, %c0_26] : memref<8x32xf32, #tpu.memory_space<vmem>>, vector<8x32xf32>
      %c0_27 = arith.constant 0 : index
      %c0_28 = arith.constant 0 : index
      %48 = vector.load %arg10[%c0_27, %c0_28] : memref<8x32xf32, #tpu.memory_space<vmem>>, vector<8x32xf32>
      tpu.vector_store %arg10[%c0_27, %c0_28], %47 {strides = array<i32>} : memref<8x32xf32, #tpu.memory_space<vmem>>, vector<8x32xf32>,
      %c0_29 = arith.constant 0 : index
      %c0_30 = arith.constant 0 : index
      %49 = vector.load %arg8[%c0_29, %c0_30] : memref<8x32xf32, #tpu.memory_space<vmem>>, vector<8x32xf32>
      %c0_31 = arith.constant 0 : index
      %c0_32 = arith.constant 0 : index
      %50 = vector.load %arg11[%c0_31, %c0_32] : memref<8x32xf32, #tpu.memory_space<vmem>>, vector<8x32xf32>
      tpu.vector_store %arg11[%c0_31, %c0_32], %49 {strides = array<i32>} : memref<8x32xf32, #tpu.memory_space<vmem>>, vector<8x32xf32>,
    } else {
    }
    %c0 = arith.constant 0 : index
    %c0_1 = arith.constant 0 : index
    %c0_2 = arith.constant 0 : index
    %3 = vector.load %arg2[%c0, %c0_1, %c0_2] : memref<1x8x32xbf16, #tpu.memory_space<vmem>>, vector<1x8x32xbf16>
    %4 = vector.shape_cast %3 : vector<1x8x32xbf16> to vector<8x32xbf16>
    %c0_3 = arith.constant 0 : index
    %c0_4 = arith.constant 0 : index
    %5 = vector.load %arg10[%c0_3, %c0_4] : memref<8x32xf32, #tpu.memory_space<vmem>>, vector<8x32xf32>
    %c0_5 = arith.constant 0 : index
    %c0_6 = arith.constant 0 : index
    %6 = vector.load %arg11[%c0_5, %c0_6] : memref<8x32xf32, #tpu.memory_space<vmem>>, vector<8x32xf32>
    %c0_7 = arith.constant 0 : index
    %c0_8 = arith.constant 0 : index
    %7 = vector.load %arg3[%c0_7, %c0_8] : memref<32x64xbf16, #tpu.memory_space<vmem>>, vector<32x64xbf16>
    %cst = arith.constant dense<0.000000e+00> : vector<8x64xf32>
    %8 = tpu.matmul %4, %7, %cst {dimension_numbers = #tpu.dot_dimension_numbers<[1], [0], [0], [1], [0, 0, 1, 1], [], []>} : vector<8x32xbf16>, vector<32x64xbf16>, vector<8x64xf32> -> vector<8x64xf32>
    %9 = arith.truncf %5 : vector<8x32xf32> to vector<8x32xbf16>
    %c0_9 = arith.constant 0 : index
    %c0_10 = arith.constant 0 : index
    %10 = vector.load %arg4[%c0_9, %c0_10] : memref<32x64xbf16, #tpu.memory_space<vmem>>, vector<32x64xbf16>
    %cst_11 = arith.constant dense<0.000000e+00> : vector<8x64xf32>
    %11 = tpu.matmul %9, %10, %cst_11 {dimension_numbers = #tpu.dot_dimension_numbers<[1], [0], [0], [1], [0, 0, 1, 1], [], []>} : vector<8x32xbf16>, vector<32x64xbf16>, vector<8x64xf32> -> vector<8x64xf32>
    %12 = arith.addf %8, %11 : vector<8x64xf32>
    %13 = arith.truncf %12 : vector<8x64xf32> to vector<8x64xbf16>
    %c0_12 = arith.constant 0 : index
    %c0_13 = arith.constant 0 : index
    %14 = vector.load %arg5[%c0_12, %c0_13] : memref<64x128xbf16, #tpu.memory_space<vmem>>, vector<64x128xbf16>
    %cst_14 = arith.constant dense<0.000000e+00> : vector<8x128xf32>
    %15 = tpu.matmul %13, %14, %cst_14 {dimension_numbers = #tpu.dot_dimension_numbers<[1], [0], [0], [1], [0, 0, 1, 1], [], []>} : vector<8x64xbf16>, vector<64x128xbf16>, vector<8x128xf32> -> vector<8x128xf32>
    %c0_15 = arith.constant 0 : index
    %c0_16 = arith.constant 0 : index
    %16 = vector.load %arg6[%c0_15, %c0_16] : memref<1x128xf32, #tpu.memory_space<vmem>>, vector<1x128xf32>
    %17 = vector.broadcast %16 : vector<1x128xf32> to vector<8x128xf32>
    %18 = arith.addf %15, %17 : vector<8x128xf32>
    %19 = tpu.iota {dimensions = array<i32: 1>} : vector<8x128xi32>
    %c64_i32 = arith.constant 64 : i32
    %20 = vector.broadcast %c64_i32 : i32 to vector<8x128xi32>
    %21 = arith.cmpi sge, %19, %20 : vector<8x128xi32>
    %c96_i32 = arith.constant 96 : i32
    %22 = vector.broadcast %c96_i32 : i32 to vector<8x128xi32>
    %23 = arith.cmpi slt, %19, %22 : vector<8x128xi32>
    %24 = arith.andi %21, %23 : vector<8x128xi1>
    %25 = math.tanh %18 : vector<8x128xf32>
    %26 = arith.negf %18 : vector<8x128xf32>
    %27 = math.exp %26 : vector<8x128xf32>
    %cst_17 = arith.constant 1.000000e+00 : f32
    %28 = vector.broadcast %cst_17 : f32 to vector<8x128xf32>
    %29 = arith.addf %28, %27 : vector<8x128xf32>
    %30 = arith.divf %28, %29 : vector<8x128xf32>
    %31 = arith.select %24, %25, %30 : vector<8x128xi1>, vector<8x128xf32>
    %32 = vector.extract_strided_slice %31 {offsets = [0, 0], sizes = [8, 32], strides = [1, 1]} : vector<8x128xf32> to vector<8x32xf32>
    %33 = vector.extract_strided_slice %31 {offsets = [0, 32], sizes = [8, 32], strides = [1, 1]} : vector<8x128xf32> to vector<8x32xf32>
    %34 = vector.extract_strided_slice %31 {offsets = [0, 64], sizes = [8, 32], strides = [1, 1]} : vector<8x128xf32> to vector<8x32xf32>
    %35 = vector.extract_strided_slice %31 {offsets = [0, 96], sizes = [8, 32], strides = [1, 1]} : vector<8x128xf32> to vector<8x32xf32>
    %36 = arith.mulf %33, %6 : vector<8x32xf32>
    %37 = arith.mulf %32, %34 : vector<8x32xf32>
    %38 = arith.addf %36, %37 : vector<8x32xf32>
    %39 = math.tanh %38 : vector<8x32xf32>
    %40 = arith.mulf %35, %39 : vector<8x32xf32>
    %c0_18 = arith.constant 0 : index
    %c0_19 = arith.constant 0 : index
    %41 = vector.load %arg10[%c0_18, %c0_19] : memref<8x32xf32, #tpu.memory_space<vmem>>, vector<8x32xf32>
    tpu.vector_store %arg10[%c0_18, %c0_19], %40 {strides = array<i32>} : memref<8x32xf32, #tpu.memory_space<vmem>>, vector<8x32xf32>,
    %c0_20 = arith.constant 0 : index
    %c0_21 = arith.constant 0 : index
    %42 = vector.load %arg11[%c0_20, %c0_21] : memref<8x32xf32, #tpu.memory_space<vmem>>, vector<8x32xf32>
    tpu.vector_store %arg11[%c0_20, %c0_21], %38 {strides = array<i32>} : memref<8x32xf32, #tpu.memory_space<vmem>>, vector<8x32xf32>,
    %43 = tpu.concatenate %40, %38 in 1 : vector<8x32xf32>, vector<8x32xf32> -> vector<8x64xf32>
    %c0_22 = arith.constant 0 : index
    %c0_23 = arith.constant 0 : index
    %c0_24 = arith.constant 0 : index
    %44 = vector.load %arg9[%c0_22, %c0_23, %c0_24] : memref<1x8x64xf32, #tpu.memory_space<vmem>>, vector<1x8x64xf32>
    %45 = vector.shape_cast %44 : vector<1x8x64xf32> to vector<8x64xf32>
    %46 = vector.shape_cast %43 : vector<8x64xf32> to vector<1x8x64xf32>
    tpu.vector_store %arg9[%c0_22, %c0_23, %c0_24], %46 {strides = array<i32>} : memref<1x8x64xf32, #tpu.memory_space<vmem>>, vector<1x8x64xf32>,
    return
  }
  func.func @transform_0(%arg0: i32, %arg1: i32) -> (i32, i32, i32) {
    %c0_i32 = arith.constant 0 : i32
    %c0_i32_0 = arith.constant 0 : i32
    return %arg1, %arg0, %c0_i32 : i32, i32, i32
  }
  func.func @transform_1(%arg0: i32, %arg1: i32) -> (i32, i32) {
    %c0_i32 = arith.constant 0 : i32
    %c0_i32_0 = arith.constant 0 : i32
    %c0_i32_1 = arith.constant 0 : i32
    return %c0_i32, %c0_i32_0 : i32, i32
  }
  func.func @transform_2(%arg0: i32, %arg1: i32) -> (i32, i32) {
    %c0_i32 = arith.constant 0 : i32
    %c0_i32_0 = arith.constant 0 : i32
    %c0_i32_1 = arith.constant 0 : i32
    return %c0_i32, %c0_i32_0 : i32, i32
  }
  func.func @transform_3(%arg0: i32, %arg1: i32) -> (i32, i32) {
    %c0_i32 = arith.constant 0 : i32
    %c0_i32_0 = arith.constant 0 : i32
    %c0_i32_1 = arith.constant 0 : i32
    return %c0_i32, %c0_i32_0 : i32, i32
  }
  func.func @transform_4(%arg0: i32, %arg1: i32) -> (i32, i32) {
    %c0_i32 = arith.constant 0 : i32
    %c0_i32_0 = arith.constant 0 : i32
    %c0_i32_1 = arith.constant 0 : i32
    return %c0_i32, %c0_i32_0 : i32, i32
  }
  func.func @transform_5(%arg0: i32, %arg1: i32) -> (i32, i32) {
    %c0_i32 = arith.constant 0 : i32
    %c0_i32_0 = arith.constant 0 : i32
    return %arg0, %c0_i32 : i32, i32
  }
  func.func @transform_6(%arg0: i32, %arg1: i32) -> (i32, i32) {
    %c0_i32 = arith.constant 0 : i32
    %c0_i32_0 = arith.constant 0 : i32
    return %arg0, %c0_i32 : i32, i32
  }
  func.func @transform_7(%arg0: i32, %arg1: i32) -> (i32, i32, i32) {
    %c0_i32 = arith.constant 0 : i32
    %c0_i32_0 = arith.constant 0 : i32
    return %arg1, %arg0, %c0_i32 : i32, i32, i32
  }
}

</mosaic_0001>

<llo_original>
// kernel: tpu_custom_call.1
$region0: #{tpu_custom_call.1}
  #allocation0 [shape = 'u32[]', space=smem, size = 0x4, offset = 0x4, fixed_abs, tag = 'smem constant byte address 0x4 - core index']
  #allocation1 [shape = 'u32[144,128]{1,0:T(1,128)}', space=vmem, size = 0x12000, scoped, tag = 'internal scratch']
  #allocation2 [shape = 'f32[8,32]{1,0:T(8,128)}', space=vmem, size = 0x1000, scoped, tag = 'scratch operand']
  #allocation3 [shape = 'f32[8,32]{1,0:T(8,128)}', space=vmem, size = 0x1000, scoped, tag = 'scratch operand']
  %s0 = inlined_call_operand.hbm [shape: bf16[16,8,32], index: 0, kind: input, shape index: {}]
  %s1 = inlined_call_operand.hbm [shape: bf16[32,64], index: 1, kind: input, shape index: {}]
  %s2 = inlined_call_operand.hbm [shape: bf16[32,64], index: 2, kind: input, shape index: {}]
  %s3 = inlined_call_operand.hbm [shape: bf16[64,128], index: 3, kind: input, shape index: {}]
  %s4 = inlined_call_operand.vmem [shape: f32[1,128], index: 4, kind: input, shape index: {}]
  %s5 = inlined_call_operand.vmem [shape: f32[8,32], index: 5, kind: input, shape index: {}]
  %s6 = inlined_call_operand.hbm [shape: f32[8,32], index: 6, kind: input, shape index: {}]
  %s7 = inlined_call_operand.hbm [shape: f32[16,8,64], index: 7, kind: output, shape index: {}]
  %s8 = sld [smem:[#allocation0]]
  $region85: #{tpu_custom_call.1} parent=0
    _
  %s10 = ssub.s32 1, %s8
  %s11 = scalar_select 0, %s10, %s8
  $region1: #{tpu_custom_call.1} parent=0
    #allocation4 [shape = 'u8[4096]{0}', space=vmem, size = 0x1000, scoped, tag = 'input window, operand 0']
    #allocation5 [shape = 's32[2]{0}', space=sflag, size = 0x8, scoped, tag = 'scoped memory for tpu_custom_call.1']
    #allocation6 [shape = 's32[2]{0}', space=sflag, size = 0x8, scoped, tag = 'scoped memory for tpu_custom_call.1']
    #allocation7 [shape = 'u8[8192]{0}', space=vmem, size = 0x2000, scoped, tag = 'input window, operand 1, single buffered']
    #allocation8 [shape = 's32[1]{0}', space=sflag, size = 0x4, scoped, tag = 'scoped memory for tpu_custom_call.1']
    #allocation9 [shape = 'u8[8192]{0}', space=vmem, size = 0x2000, scoped, tag = 'input window, operand 2, single buffered']
    #allocation10 [shape = 'u8[16384]{0}', space=vmem, size = 0x4000, scoped, tag = 'input window, operand 3, single buffered']
    #allocation11 [shape = 's32[1]{0}', space=sflag, size = 0x4, scoped, tag = 'scoped memory for tpu_custom_call.1']
    #allocation12 [shape = 'u8[4096]{0}', space=vmem, size = 0x1000, scoped, tag = 'input window, operand 6, single buffered']
    #allocation13 [shape = 'u8[8192]{0}', space=vmem, size = 0x2000, scoped, tag = 'output window, operand 0']
    %12 = vsyncpa [#allocation5], 0
    %s13 = scalar_lea.sflag [#allocation5], 1
    %14 = vsyncpa %s13, 0
    %15 = vsyncpa [#allocation8], 0
    %16 = vsyncpa [#allocation11], 0
    %17 = vsyncpa [#allocation6], 0
    %s18 = scalar_lea.sflag [#allocation6], 1
    %19 = vsyncpa %s18, 0
    loop: start=0, step=1, limit=18
    $region2: #{tpu_custom_call.1} parent=1 // loop_pre_header
      _
    $region3: #{tpu_custom_call.1} parent=1 // loop_header
      %s21 = sphi 0, %s25
      %p22 = scmp.ge.s32.totalorder %s21, 18
      %s28 = sphi 0, %s40
      %s29 = sphi 0, %s36
      %s30 = sphi 0, %s28
      %s31 = sphi 0, %s29
      %s32 = sphi 0, %s30
      %s33 = sphi 0, %s31
      %s45 = sphi 0, %s47
      %s48 = sphi 0, %s45
      %s49 = sphi 0, %s48
      %s65 = sphi 0, %s49
      %s69 = sphi 0, %s69
      %s71 = sphi 0, %s69
      %s72 = sphi 0, %s71
      %s86 = sphi 0, %s72
      %s90 = sphi 0, %s90
      %s92 = sphi 0, %s90
      %s93 = sphi 0, %s92
      %s107 = sphi 0, %s93
      %s111 = sphi 0, %s111
      %s113 = sphi 0, %s111
      %s114 = sphi 0, %s113
      %s128 = sphi 0, %s114
      %s132 = sphi 0, %s132
      %s134 = sphi 0, %s132
      %s135 = sphi 0, %s134
      %s149 = sphi 0, %s135
      %s155 = sphi 0, %s157
      %s158 = sphi 0, %s155
      %s159 = sphi 0, %s158
      %s175 = sphi 0, %s159
      %s181 = sphi 0, %s183
      %s184 = sphi 0, %s181
      %s185 = sphi 0, %s184
      %s201 = sphi 0, %s185
      %s209 = sphi 0, %s211
      %s212 = sphi 0, %s209
      %s213 = sphi 0, %s212
      %s229 = sphi 0, %s213
    $region4: #{tpu_custom_call.1} parent=1 // loop_header_branch
      %24 = sbr.rel (%p22) target = $region8
    $region5: #{tpu_custom_call.1} parent=1 // loop_body
      %s26 = ssub.s32 %s21, 1
      %s27 = ssub.s32 %s21, 2
      %s34 = sadd.s32 1, %s29
      %p35 = scmp.ge.s32.totalorder %s34, 16
      %s36 = scalar_select %p35, 0, %s34
      %s37 = sadd.s32 1, %s28
      %s38 = scalar_select %p35, %s37, %s28
      %p39 = scmp.ge.s32.totalorder %s38, 1
      %s40 = scalar_select %p39, 0, %s38
      %s41 = ssub.s32 %s29, %s36
      %s42 = ssub.s32 %s28, %s40
      %s43 = sor.u32 %s41, %s42
      %p44 = scmp.eq.s32.totalorder %s43, 0
      %s46 = sadd.s32 %s45, 1
      %s47 = scalar_select %p44, %s45, %s46
      %p50 = pneg %p44
      %p51 = scmp.eq.s32.totalorder %s21, 15
      %p52 = por %p50, %p51
      %p53 = scmp.ne.s32.totalorder %s45, %s48
      %p54 = scmp.eq.s32.totalorder %s21, 0
      %p55 = por %p53, %p54
      %p56 = scmp.ne.s32.totalorder %s45, %s48
      %p57 = scmp.eq.s32.totalorder %s26, 15
      %p58 = por %p56, %p57
      %p59 = scmp.ne.s32.totalorder %s48, %s49
      %p60 = scmp.eq.s32.totalorder %s26, 0
      %p61 = por %p59, %p60
      %p62 = scmp.ne.s32.totalorder %s48, %s49
      %p63 = scmp.eq.s32.totalorder %s27, 15
      %p64 = por %p62, %p63
      %p66 = scmp.ne.s32.totalorder %s49, %s65
      %p67 = scmp.eq.s32.totalorder %s27, 0
      %p68 = por %p66, %p67
      %s70 = sadd.s32 %s69, 1
      %p73 = scmp.eq.s32.totalorder %s21, 15
      %p74 = scmp.ne.s32.totalorder %s69, %s71
      %p75 = scmp.eq.s32.totalorder %s21, 0
      %p76 = por %p74, %p75
      %p77 = scmp.ne.s32.totalorder %s69, %s71
      %p78 = scmp.eq.s32.totalorder %s26, 15
      %p79 = por %p77, %p78
      %p80 = scmp.ne.s32.totalorder %s71, %s72
      %p81 = scmp.eq.s32.totalorder %s26, 0
      %p82 = por %p80, %p81
      %p83 = scmp.ne.s32.totalorder %s71, %s72
      %p84 = scmp.eq.s32.totalorder %s27, 15
      %p85 = por %p83, %p84
      %p87 = scmp.ne.s32.totalorder %s72, %s86
      %p88 = scmp.eq.s32.totalorder %s27, 0
      %p89 = por %p87, %p88
      %s91 = sadd.s32 %s90, 1
      %p94 = scmp.eq.s32.totalorder %s21, 15
      %p95 = scmp.ne.s32.totalorder %s90, %s92
      %p96 = scmp.eq.s32.totalorder %s21, 0
      %p97 = por %p95, %p96
      %p98 = scmp.ne.s32.totalorder %s90, %s92
      %p99 = scmp.eq.s32.totalorder %s26, 15
      %p100 = por %p98, %p99
      %p101 = scmp.ne.s32.totalorder %s92, %s93
      %p102 = scmp.eq.s32.totalorder %s26, 0
      %p103 = por %p101, %p102
      %p104 = scmp.ne.s32.totalorder %s92, %s93
      %p105 = scmp.eq.s32.totalorder %s27, 15
      %p106 = por %p104, %p105
      %p108 = scmp.ne.s32.totalorder %s93, %s107
      %p109 = scmp.eq.s32.totalorder %s27, 0
      %p110 = por %p108, %p109
      %s112 = sadd.s32 %s111, 1
      %p115 = scmp.eq.s32.totalorder %s21, 15
      %p116 = scmp.ne.s32.totalorder %s111, %s113
      %p117 = scmp.eq.s32.totalorder %s21, 0
      %p118 = por %p116, %p117
      %p119 = scmp.ne.s32.totalorder %s111, %s113
      %p120 = scmp.eq.s32.totalorder %s26, 15
      %p121 = por %p119, %p120
      %p122 = scmp.ne.s32.totalorder %s113, %s114
      %p123 = scmp.eq.s32.totalorder %s26, 0
      %p124 = por %p122, %p123
      %p125 = scmp.ne.s32.totalorder %s113, %s114
      %p126 = scmp.eq.s32.totalorder %s27, 15
      %p127 = por %p125, %p126
      %p129 = scmp.ne.s32.totalorder %s114, %s128
      %p130 = scmp.eq.s32.totalorder %s27, 0
      %p131 = por %p129, %p130
      %s133 = sadd.s32 %s132, 1
      %p136 = scmp.eq.s32.totalorder %s21, 15
      %p137 = scmp.ne.s32.totalorder %s132, %s134
      %p138 = scmp.eq.s32.totalorder %s21, 0
      %p139 = por %p137, %p138
      %p140 = scmp.ne.s32.totalorder %s132, %s134
      %p141 = scmp.eq.s32.totalorder %s26, 15
      %p142 = por %p140, %p141
      %p143 = scmp.ne.s32.totalorder %s134, %s135
      %p144 = scmp.eq.s32.totalorder %s26, 0
      %p145 = por %p143, %p144
      %p146 = scmp.ne.s32.totalorder %s134, %s135
      %p147 = scmp.eq.s32.totalorder %s27, 15
      %p148 = por %p146, %p147
      %p150 = scmp.ne.s32.totalorder %s135, %s149
      %p151 = scmp.eq.s32.totalorder %s27, 0
      %p152 = por %p150, %p151
      %s153 = ssub.s32 %s28, %s40
      %p154 = scmp.eq.s32.totalorder %s153, 0
      %s156 = sadd.s32 %s155, 1
      %s157 = scalar_select %p154, %s155, %s156
      %p160 = pneg %p154
      %p161 = scmp.eq.s32.totalorder %s21, 15
      %p162 = por %p160, %p161
      %p163 = scmp.ne.s32.totalorder %s155, %s158
      %p164 = scmp.eq.s32.totalorder %s21, 0
      %p165 = por %p163, %p164
      %p166 = scmp.ne.s32.totalorder %s155, %s158
      %p167 = scmp.eq.s32.totalorder %s26, 15
      %p168 = por %p166, %p167
      %p169 = scmp.ne.s32.totalorder %s158, %s159
      %p170 = scmp.eq.s32.totalorder %s26, 0
      %p171 = por %p169, %p170
      %p172 = scmp.ne.s32.totalorder %s158, %s159
      %p173 = scmp.eq.s32.totalorder %s27, 15
      %p174 = por %p172, %p173
      %p176 = scmp.ne.s32.totalorder %s159, %s175
      %p177 = scmp.eq.s32.totalorder %s27, 0
      %p178 = por %p176, %p177
      %s179 = ssub.s32 %s28, %s40
      %p180 = scmp.eq.s32.totalorder %s179, 0
      %s182 = sadd.s32 %s181, 1
      %s183 = scalar_select %p180, %s181, %s182
      %p186 = pneg %p180
      %p187 = scmp.eq.s32.totalorder %s21, 15
      %p188 = por %p186, %p187
      %p189 = scmp.ne.s32.totalorder %s181, %s184
      %p190 = scmp.eq.s32.totalorder %s21, 0
      %p191 = por %p189, %p190
      %p192 = scmp.ne.s32.totalorder %s181, %s184
      %p193 = scmp.eq.s32.totalorder %s26, 15
      %p194 = por %p192, %p193
      %p195 = scmp.ne.s32.totalorder %s184, %s185
      %p196 = scmp.eq.s32.totalorder %s26, 0
      %p197 = por %p195, %p196
      %p198 = scmp.ne.s32.totalorder %s184, %s185
      %p199 = scmp.eq.s32.totalorder %s27, 15
      %p200 = por %p198, %p199
      %p202 = scmp.ne.s32.totalorder %s185, %s201
      %p203 = scmp.eq.s32.totalorder %s27, 0
      %p204 = por %p202, %p203
      %s205 = ssub.s32 %s29, %s36
      %s206 = ssub.s32 %s28, %s40
      %s207 = sor.u32 %s205, %s206
      %p208 = scmp.eq.s32.totalorder %s207, 0
      %s210 = sadd.s32 %s209, 1
      %s211 = scalar_select %p208, %s209, %s210
      %p214 = pneg %p208
      %p215 = scmp.eq.s32.totalorder %s21, 15
      %p216 = por %p214, %p215
      %p217 = scmp.ne.s32.totalorder %s209, %s212
      %p218 = scmp.eq.s32.totalorder %s21, 0
      %p219 = por %p217, %p218
      %p220 = scmp.ne.s32.totalorder %s209, %s212
      %p221 = scmp.eq.s32.totalorder %s26, 15
      %p222 = por %p220, %p221
      %p223 = scmp.ne.s32.totalorder %s212, %s213
      %p224 = scmp.eq.s32.totalorder %s26, 0
      %p225 = por %p223, %p224
      %p226 = scmp.ne.s32.totalorder %s212, %s213
      %p227 = scmp.eq.s32.totalorder %s27, 15
      %p228 = por %p226, %p227
      %p230 = scmp.ne.s32.totalorder %s213, %s229
      %p231 = scmp.eq.s32.totalorder %s27, 0
      %p232 = por %p230, %p231
      %p233 = scmp.le.s32.totalorder 1, %s21
      %p234 = scmp.lt.s32.totalorder %s21, 17
      %p235 = pnand %p233, %p234
      %p236 = pneg %p235
      // Predicated region
      $region9: #{tpu_custom_call.1} parent=5 // pred_check
        _
      $region10: #{tpu_custom_call.1} parent=5 // pred_check_branch
        %238 = sbr.rel (%p235) target = $region12
      $region11: #{tpu_custom_call.1} parent=5 // pred_region
        %s239 = ssub.s32 %s21, 1
        // Predicated region
        $region13: #{tpu_custom_call.1} parent=11 // pred_check
          %p240 = pneg %p82
        $region14: #{tpu_custom_call.1} parent=11 // pred_check_branch
          %242 = sbr.rel (%p240) target = $region16
        $region15: #{tpu_custom_call.1} parent=11 // pred_region
          %s244 = ssub.s32 256, 256
          %245 = vsyncadd [#allocation8], %s244
          %s246 = sshll.u32 [#allocation7], 4
          %s247 = int_to_ptr.vmem [resolvable:$true] %s246
          %252 = dma.hbm_to_vmem [thread:$0]  %s1, 256, %s247, [#allocation8], 64, 64, 4
        $region16: #{tpu_custom_call.1} parent=11 // pred_fallthru
          _
        // Predicated region
        $region17: #{tpu_custom_call.1} parent=11 // pred_check
          %p253 = pneg %p103
        $region18: #{tpu_custom_call.1} parent=11 // pred_check_branch
          %255 = sbr.rel (%p253) target = $region20
        $region19: #{tpu_custom_call.1} parent=11 // pred_region
          %s257 = ssub.s32 256, 256
          %258 = vsyncadd [#allocation8], %s257
          %s259 = sshll.u32 [#allocation9], 4
          %s260 = int_to_ptr.vmem [resolvable:$true] %s259
          %265 = dma.hbm_to_vmem [thread:$0]  %s2, 256, %s260, [#allocation8], 64, 64, 4
        $region20: #{tpu_custom_call.1} parent=11 // pred_fallthru
          _
        // Predicated region
        $region21: #{tpu_custom_call.1} parent=11 // pred_check
          %p266 = pneg %p124
        $region22: #{tpu_custom_call.1} parent=11 // pred_check_branch
          %268 = sbr.rel (%p266) target = $region24
        $region23: #{tpu_custom_call.1} parent=11 // pred_region
          %s270 = ssub.s32 512, 512
          %271 = vsyncadd [#allocation11], %s270
          %s272 = sshll.u32 [#allocation10], 4
          %s273 = int_to_ptr.vmem [resolvable:$true] %s272
          %278 = dma.hbm_to_vmem [thread:$0]  %s3, 512, %s273, [#allocation11], 64, 64, 4
        $region24: #{tpu_custom_call.1} parent=11 // pred_fallthru
          _
        // Predicated region
        $region25: #{tpu_custom_call.1} parent=11 // pred_check
          %p279 = pneg %p145
        $region26: #{tpu_custom_call.1} parent=11 // pred_check_branch
          %281 = sbr.rel (%p279) target = $region28
        $region27: #{tpu_custom_call.1} parent=11 // pred_region
          _
        $region28: #{tpu_custom_call.1} parent=11 // pred_fallthru
          _
        // Predicated region
        $region29: #{tpu_custom_call.1} parent=11 // pred_check
          %p282 = pneg %p171
        $region30: #{tpu_custom_call.1} parent=11 // pred_check_branch
          %284 = sbr.rel (%p282) target = $region32
        $region31: #{tpu_custom_call.1} parent=11 // pred_region
          %p285 = scmp.lt.s32.totalorder %s30, 0
          %s286 = scalar_select %p285, %s30, 0
          %s287 = smul.addr %s286, 8
          %s288 = scalar_lea.vmem %s5, %s287
        $region32: #{tpu_custom_call.1} parent=11 // pred_fallthru
          _
        // Predicated region
        $region33: #{tpu_custom_call.1} parent=11 // pred_check
          %p289 = pneg %p197
        $region34: #{tpu_custom_call.1} parent=11 // pred_check_branch
          %291 = sbr.rel (%p289) target = $region36
        $region35: #{tpu_custom_call.1} parent=11 // pred_region
          %s293 = ssub.s32 128, 128
          %294 = vsyncadd [#allocation11], %s293
          %s295 = smul.addr %s30, 128
          %s296 = scalar_lea.hbm %s6, %s295
          %s298 = sshll.u32 [#allocation12], 4
          %s299 = int_to_ptr.vmem [resolvable:$true] %s298
          %301 = dma.hbm_to_vmem [thread:$0]  %s296, 128, %s299, [#allocation11]
        $region36: #{tpu_custom_call.1} parent=11 // pred_fallthru
          _
      $region12: #{tpu_custom_call.1} parent=5 // pred_fallthru
        _
      %p302 = scmp.lt.s32.totalorder %s21, 16
      // Predicated region
      $region37: #{tpu_custom_call.1} parent=5 // pred_check
        %p303 = pneg %p302
      $region38: #{tpu_custom_call.1} parent=5 // pred_check_branch
        %305 = sbr.rel (%p303) target = $region40
      $region39: #{tpu_custom_call.1} parent=5 // pred_region
        // Predicated region
        $region41: #{tpu_custom_call.1} parent=39 // pred_check
          %p306 = pneg %p55
        $region42: #{tpu_custom_call.1} parent=39 // pred_check_branch
          %308 = sbr.rel (%p306) target = $region44
        $region43: #{tpu_custom_call.1} parent=39 // pred_region
          %s309 = sand.u32 %s45, 1
          %s310 = scalar_lea.sflag [#allocation5], %s309
          %s311 = sand.u32 %s45, 1
          %s312 = smul.addr %s311, 4
          %s313 = scalar_lea.vmem [#allocation4], %s312
          %s315 = ssub.s32 64, 64
          %316 = vsyncadd %s310, %s315
          %s317 = sadd.s32 %s28, %s29
          %s318 = smul.addr %s317, 64
          %s319 = scalar_lea.hbm %s0, %s318
          %s321 = sshll.u32 %s313, 4
          %s322 = int_to_ptr.vmem [resolvable:$true] %s321
          %324 = dma.hbm_to_vmem [thread:$0]  %s319, 64, %s322, %s310
        $region44: #{tpu_custom_call.1} parent=39 // pred_fallthru
          _
      $region40: #{tpu_custom_call.1} parent=5 // pred_fallthru
        _
      %p325 = scmp.le.s32.totalorder 1, %s21
      %p326 = scmp.lt.s32.totalorder %s21, 17
      %p327 = pnand %p325, %p326
      %p328 = pneg %p327
      // Predicated region
      $region45: #{tpu_custom_call.1} parent=5 // pred_check
        _
      $region46: #{tpu_custom_call.1} parent=5 // pred_check_branch
        %330 = sbr.rel (%p327) target = $region48
      $region47: #{tpu_custom_call.1} parent=5 // pred_region
        %s331 = ssub.s32 %s21, 1
        %s332 = sand.u32 %s48, 1
        %s333 = scalar_lea.sflag [#allocation5], %s332
        %s334 = sand.u32 %s48, 1
        %s335 = smul.addr %s334, 4
        %s336 = scalar_lea.vmem [#allocation4], %s335
        // Predicated region
        $region49: #{tpu_custom_call.1} parent=47 // pred_check
          %p337 = pneg %p61
        $region50: #{tpu_custom_call.1} parent=47 // pred_check_branch
          %339 = sbr.rel (%p337) target = $region52
        $region51: #{tpu_custom_call.1} parent=47 // pred_region
          %340 = dma.done %s333, 64
        $region52: #{tpu_custom_call.1} parent=47 // pred_fallthru
          _
        // Predicated region
        $region53: #{tpu_custom_call.1} parent=47 // pred_check
          %p341 = pneg %p82
        $region54: #{tpu_custom_call.1} parent=47 // pred_check_branch
          %343 = sbr.rel (%p341) target = $region56
        $region55: #{tpu_custom_call.1} parent=47 // pred_region
          %344 = dma.done [#allocation8], 256
        $region56: #{tpu_custom_call.1} parent=47 // pred_fallthru
          _
        // Predicated region
        $region57: #{tpu_custom_call.1} parent=47 // pred_check
          %p345 = pneg %p103
        $region58: #{tpu_custom_call.1} parent=47 // pred_check_branch
          %347 = sbr.rel (%p345) target = $region60
        $region59: #{tpu_custom_call.1} parent=47 // pred_region
          %348 = dma.done [#allocation8], 256
        $region60: #{tpu_custom_call.1} parent=47 // pred_fallthru
          _
        // Predicated region
        $region61: #{tpu_custom_call.1} parent=47 // pred_check
          %p349 = pneg %p124
        $region62: #{tpu_custom_call.1} parent=47 // pred_check_branch
          %351 = sbr.rel (%p349) target = $region64
        $region63: #{tpu_custom_call.1} parent=47 // pred_region
          %352 = dma.done [#allocation11], 512
        $region64: #{tpu_custom_call.1} parent=47 // pred_fallthru
          _
        // Predicated region
        $region65: #{tpu_custom_call.1} parent=47 // pred_check
          %p353 = pneg %p197
        $region66: #{tpu_custom_call.1} parent=47 // pred_check_branch
          %355 = sbr.rel (%p353) target = $region68
        $region67: #{tpu_custom_call.1} parent=47 // pred_region
          %356 = dma.done [#allocation11], 128
        $region68: #{tpu_custom_call.1} parent=47 // pred_fallthru
          _
        %s357 = sand.u32 %s48, 1
        %s358 = scalar_lea.sflag [#allocation5], %s357
        %s359 = sand.u32 %s48, 1
        %s360 = smul.addr %s359, 4
        %s361 = scalar_lea.vmem [#allocation4], %s360
        %p362 = pneg %p61
        %p363 = pneg %p58
        %p364 = pneg %p82
        %p365 = pneg %p79
        %p366 = pneg %p103
        %p367 = pneg %p100
        %p368 = pneg %p124
        %p369 = pneg %p121
        %p370 = pneg %p145
        %p371 = pneg %p142
        %p372 = scmp.lt.s32.totalorder %s30, 0
        %s373 = scalar_select %p372, %s30, 0
        %s374 = smul.addr %s373, 8
        %s375 = scalar_lea.vmem %s5, %s374
        %p376 = pneg %p171
        %p377 = pneg %p168
        %p378 = pneg %p197
        %p379 = pneg %p194
        %p380 = pneg %p225
        %p381 = pneg %p222
        %s382 = sand.u32 %s212, 1
        %s383 = scalar_lea.sflag [#allocation6], %s382
        %s384 = sand.u32 %s212, 1
        %s385 = smul.addr %s384, 8
        %s386 = scalar_lea.vmem [#allocation13], %s385
        %p387 = scmp.lt.s32.totalorder %s30, 0
        %s388 = scalar_select %p387, %s30, 0
        %s389 = smul.addr %s388, 8
        %s390 = scalar_lea.vmem %s5, %s389
        %p392 = scmp.eq.s32.totalorder %s31, 0
        // Predicated region
        $region69: #{tpu_custom_call.1} parent=47 // pred_check
          %p393 = pneg %p392
        $region70: #{tpu_custom_call.1} parent=47 // pred_check_branch
          %395 = sbr.rel (%p393) target = $region72
        $region71: #{tpu_custom_call.1} parent=47 // pred_region
          %v396 = vld [vmem:[%s390] sm:$0xff]
          %vm397 = vcmask 261120
          %398 = vst.msk [vmem:[#allocation2] sm:$0xff] %vm397, %v396
          %v399 = vld [vmem:[#allocation12] sm:$0xff]
          %400 = vst.msk [vmem:[#allocation3] sm:$0xff] %vm397, %v399
        $region72: #{tpu_custom_call.1} parent=47 // pred_fallthru
          _
        %v401 = vld [vmem:[%s336] sm:$0xf]
        %v402 = vld [vmem:[#allocation2] sm:$0xff]
        %v403 = vld [vmem:[#allocation3] sm:$0xff]
        %v404 = vld [vmem:[#allocation7] sm:$0xf]
        %v405 = vld [vmem:[#allocation7 + $0x4] sm:$0xf]
        %v406 = vld [vmem:[#allocation7 + $0x8] sm:$0xf]
        %v407 = vld [vmem:[#allocation7 + $0xc] sm:$0xf]
        %v408 = vpack.c.bf16 %v402, %v402
        %v409 = vld [vmem:[#allocation9] sm:$0xf]
        %v410 = vld [vmem:[#allocation9 + $0x4] sm:$0xf]
        %v411 = vld [vmem:[#allocation9 + $0x8] sm:$0xf]
        %v412 = vld [vmem:[#allocation9 + $0xc] sm:$0xf]
        %v417 = vunpack.c.l.b16 %v409
        %v418 = vunpack.c.l.b16 %v410
        %v419 = vunpack.c.l.b16 %v411
        %v420 = vunpack.c.l.b16 %v412
        %v421 = vpack.c.b16 %v418, %v417
        %v422 = vpack.c.b16 %v420, %v419
        %vm425 = vcmask 261120
        %v427 = vsel %vm425, %v408, 0
        %429 = vmatprep.subr.bf16.mxu0 0
        %430 = vmatpush1.bf16.msra.mxu0 0
        %431 = vmatprep.subr.bf16.mxu0 0
        %432 = vmatpush1.bf16.msra.mxu0 0
        %433 = vmatprep.subr.bf16.mxu0 0
        %434 = vmatpush1.bf16.msra.mxu0 0
        %435 = vmatprep.subr.bf16.mxu0 0
        %436 = vmatpush1.bf16.msra.mxu0 0
        %437 = vmatprep.subr.bf16.mxu0 0
        %438 = vmatpush1.bf16.msra.mxu0 0
        %439 = vmatprep.subr.bf16.mxu0 0
        %440 = vmatpush1.bf16.msra.mxu0 0
        %441 = vmatprep.subr.bf16.mxu0 0
        %442 = vmatpush1.bf16.msra.mxu0 %v422
        %443 = vmatprep.subr.bf16.mxu0 0
        %444 = vmatpush1.bf16.msra.mxu0 %v421
        %445 = vmatprep.subr.bf16.mxu0 0
        %446 = vmatpush2.bf16.msra.mxu0 0
        %447 = vmatprep.subr.bf16.mxu0 0
        %448 = vmatpush2.bf16.msra.mxu0 0
        %449 = vmatprep.subr.bf16.mxu0 0
        %450 = vmatpush2.bf16.msra.mxu0 0
        %451 = vmatprep.subr.bf16.mxu0 0
        %452 = vmatpush2.bf16.msra.mxu0 0
        %453 = vmatprep.subr.bf16.mxu0 0
        %454 = vmatpush2.bf16.msra.mxu0 0
        %455 = vmatprep.subr.bf16.mxu0 0
        %456 = vmatpush2.bf16.msra.mxu0 0
        %457 = vmatprep.subr.bf16.mxu0 0
        %458 = vmatpush2.bf16.msra.mxu0 0
        %459 = vmatprep.subr.bf16.mxu0 0
        %460 = vmatpush2.bf16.msra.mxu0 0
        %461 = vmatprep.mubr.bf16.mxu0 0
        %462 = vmatmul.mubr.bf16.gmra.mxu0 %v427
        %v463 = vpop.f32.mrf.mxu0
        %v464 = vadd.f32 0.0, %v463
        %v465 = vpop.f32.mrf.mxu0
        %v466 = vpop.f32.mrf.mxu0
        %v467 = vpop.f32.mrf.mxu0
        %468 = vdwg.mxu0
        %v473 = vunpack.c.l.b16 %v404
        %v474 = vunpack.c.l.b16 %v405
        %v475 = vunpack.c.l.b16 %v406
        %v476 = vunpack.c.l.b16 %v407
        %v477 = vpack.c.b16 %v474, %v473
        %v478 = vpack.c.b16 %v476, %v475
        %v482 = vsel %vm425, %v401, 0
        %484 = vmatprep.subr.bf16.mxu0 0
        %485 = vmatpush1.bf16.msra.mxu0 0
        %486 = vmatprep.subr.bf16.mxu0 0
        %487 = vmatpush1.bf16.msra.mxu0 0
        %488 = vmatprep.subr.bf16.mxu0 0
        %489 = vmatpush1.bf16.msra.mxu0 0
        %490 = vmatprep.subr.bf16.mxu0 0
        %491 = vmatpush1.bf16.msra.mxu0 0
        %492 = vmatprep.subr.bf16.mxu0 0
        %493 = vmatpush1.bf16.msra.mxu0 0
        %494 = vmatprep.subr.bf16.mxu0 0
        %495 = vmatpush1.bf16.msra.mxu0 0
        %496 = vmatprep.subr.bf16.mxu0 0
        %497 = vmatpush1.bf16.msra.mxu0 %v478
        %498 = vmatprep.subr.bf16.mxu0 0
        %499 = vmatpush1.bf16.msra.mxu0 %v477
        %500 = vmatprep.subr.bf16.mxu0 0
        %501 = vmatpush2.bf16.msra.mxu0 0
        %502 = vmatprep.subr.bf16.mxu0 0
        %503 = vmatpush2.bf16.msra.mxu0 0
        %504 = vmatprep.subr.bf16.mxu0 0
        %505 = vmatpush2.bf16.msra.mxu0 0
        %506 = vmatprep.subr.bf16.mxu0 0
        %507 = vmatpush2.bf16.msra.mxu0 0
        %508 = vmatprep.subr.bf16.mxu0 0
        %509 = vmatpush2.bf16.msra.mxu0 0
        %510 = vmatprep.subr.bf16.mxu0 0
        %511 = vmatpush2.bf16.msra.mxu0 0
        %512 = vmatprep.subr.bf16.mxu0 0
        %513 = vmatpush2.bf16.msra.mxu0 0
        %514 = vmatprep.subr.bf16.mxu0 0
        %515 = vmatpush2.bf16.msra.mxu0 0
        %516 = vmatprep.mubr.bf16.mxu0 0
        %517 = vmatmul.mubr.bf16.gmra.mxu0 %v482
        %v518 = vpop.f32.mrf.mxu0
        %v519 = vadd.f32 %v464, %v518
        %v520 = vpop.f32.mrf.mxu0
        %v521 = vpop.f32.mrf.mxu0
        %v522 = vpop.f32.mrf.mxu0
        %523 = vdwg.mxu0
        %v524 = vpack.c.bf16 %v519, %v519
        %v525 = vld [vmem:[#allocation10] sm:$0xf]
        %v526 = vld [vmem:[#allocation10 + $0x4] sm:$0xf]
        %v527 = vld [vmem:[#allocation10 + $0x8] sm:$0xf]
        %v528 = vld [vmem:[#allocation10 + $0xc] sm:$0xf]
        %v529 = vld [vmem:[#allocation10 + $0x10] sm:$0xf]
        %v530 = vld [vmem:[#allocation10 + $0x14] sm:$0xf]
        %v531 = vld [vmem:[#allocation10 + $0x18] sm:$0xf]
        %v532 = vld [vmem:[#allocation10 + $0x1c] sm:$0xf]
        %v533 = vld [vmem:[%s4] sm:$0x1]
        %v535 = vlaneseq
        %v536 = vshrl.u32 %v535, 7
        %v537 = vsub.s32 0, %v536
        %v538 = vrot.slane %v533, %v537
        %v548 = vunpack.c.l.b16 %v525
        %v549 = vunpack.c.l.b16 %v526
        %v550 = vunpack.c.l.b16 %v527
        %v551 = vunpack.c.l.b16 %v528
        %v552 = vunpack.c.l.b16 %v529
        %v553 = vunpack.c.l.b16 %v530
        %v554 = vunpack.c.l.b16 %v531
        %v555 = vunpack.c.l.b16 %v532
        %v556 = vpack.c.b16 %v549, %v548
        %v557 = vpack.c.b16 %v551, %v550
        %v558 = vpack.c.b16 %v553, %v552
        %v559 = vpack.c.b16 %v555, %v554
        %vm564 = vcmask 523264
        %v566 = vsel %vm564, %v524, 0
        %568 = vmatprep.subr.bf16.mxu0 0
        %569 = vmatpush1.bf16.msra.mxu0 0
        %570 = vmatprep.subr.bf16.mxu0 0
        %571 = vmatpush1.bf16.msra.mxu0 0
        %572 = vmatprep.subr.bf16.mxu0 0
        %573 = vmatpush1.bf16.msra.mxu0 0
        %574 = vmatprep.subr.bf16.mxu0 0
        %575 = vmatpush1.bf16.msra.mxu0 0
        %576 = vmatprep.subr.bf16.mxu0 0
        %577 = vmatpush1.bf16.msra.mxu0 %v559
        %578 = vmatprep.subr.bf16.mxu0 0
        %579 = vmatpush1.bf16.msra.mxu0 %v558
        %580 = vmatprep.subr.bf16.mxu0 0
        %581 = vmatpush1.bf16.msra.mxu0 %v557
        %582 = vmatprep.subr.bf16.mxu0 0
        %583 = vmatpush1.bf16.msra.mxu0 %v556
        %584 = vmatprep.subr.bf16.mxu0 0
        %585 = vmatpush2.bf16.msra.mxu0 0
        %586 = vmatprep.subr.bf16.mxu0 0
        %587 = vmatpush2.bf16.msra.mxu0 0
        %588 = vmatprep.subr.bf16.mxu0 0
        %589 = vmatpush2.bf16.msra.mxu0 0
        %590 = vmatprep.subr.bf16.mxu0 0
        %591 = vmatpush2.bf16.msra.mxu0 0
        %592 = vmatprep.subr.bf16.mxu0 0
        %593 = vmatpush2.bf16.msra.mxu0 0
        %594 = vmatprep.subr.bf16.mxu0 0
        %595 = vmatpush2.bf16.msra.mxu0 0
        %596 = vmatprep.subr.bf16.mxu0 0
        %597 = vmatpush2.bf16.msra.mxu0 0
        %598 = vmatprep.subr.bf16.mxu0 0
        %599 = vmatpush2.bf16.msra.mxu0 0
        %600 = vmatprep.mubr.bf16.mxu0 0
        %601 = vmatmul.mubr.bf16.gmra.mxu0 %v566
        %v602 = vpop.f32.mrf.mxu0
        %v603 = vadd.f32 %v538, %v602
        %v604 = vpop.f32.mrf.mxu0
        %v605 = vpop.f32.mrf.mxu0
        %v606 = vpop.f32.mrf.mxu0
        %607 = vdwg.mxu0
        %v608 = vlaneseq
        %v609 = vand.u32 %v608, 127
        %vm610 = vcmp.ge.s32.totalorder %v609, 64
        %vm611 = vcmp.lt.s32.totalorder %v609, 96
        %vm612 = vmand %vm610, %vm611
        %v613 = vtanh.pop %v603
        %v614 = vxor.u32 %v603, 2147483648
        %v615 = vmul.f32 %v614, 1.442695
        %v616 = vpow.pop %v615
        %v617 = vadd.f32 %v616, 1.0
        %v618 = vrcp.pop %v617
        %v619 = vmul.f32 1.0, %v618
        %v620 = vsel %vm612, %v613, %v619
        %622 = vrot.lane.b32.xlu0 %v403, 32
        %v623 = vpop.permute.xlu0 %622
        %v625 = vmul.f32 %v620, %v623
        %627 = vrot.lane.b32.xlu0 %v620, 64
        %v628 = vpop.permute.xlu0 %627
        %v630 = vmul.f32 %v620, %v628
        %632 = vrot.lane.b32.xlu0 %v630, 32
        %v633 = vpop.permute.xlu0 %632
        %v635 = vadd.f32 %v625, %v633
        %v636 = vtanh.pop %v635
        %638 = vrot.lane.b32.xlu0 %v636, 64
        %v639 = vpop.permute.xlu0 %638
        %v641 = vmul.f32 %v620, %v639
        %643 = vrot.lane.b32.xlu0 %v641, 32
        %v644 = vpop.permute.xlu0 %643
        %646 = vst.msk [vmem:[#allocation2] sm:$0xff] %vm425, %v644
        %648 = vrot.lane.b32.xlu0 %v635, 96
        %v649 = vpop.permute.xlu0 %648
        %651 = vst.msk [vmem:[#allocation3] sm:$0xff] %vm425, %v649
        %v652 = vsel %vm425, %v644, %v635
        %653 = vst.msk [vmem:[%s386] sm:$0xff] %vm564, %v652
        %s654 = sand.u32 %s212, 1
        %s655 = scalar_lea.sflag [#allocation6], %s654
        %s656 = sand.u32 %s212, 1
        %s657 = smul.addr %s656, 8
        %s658 = scalar_lea.vmem [#allocation13], %s657
        // Predicated region
        $region73: #{tpu_custom_call.1} parent=47 // pred_check
          %p659 = pneg %p222
        $region74: #{tpu_custom_call.1} parent=47 // pred_check_branch
          %661 = sbr.rel (%p659) target = $region76
        $region75: #{tpu_custom_call.1} parent=47 // pred_region
          %s663 = ssub.s32 128, 128
          %664 = vsyncadd %s655, %s663
          %s665 = sadd.s32 %s30, %s31
          %s666 = smul.addr %s665, 128
          %s667 = scalar_lea.hbm %s7, %s666
          %s669 = sshll.u32 %s658, 4
          %s670 = int_to_ptr.vmem [resolvable:$true] %s669
          %672 = dma.vmem_to_hbm [thread:$0]  %s670, 128, %s667, %s655
        $region76: #{tpu_custom_call.1} parent=47 // pred_fallthru
          _
      $region48: #{tpu_custom_call.1} parent=5 // pred_fallthru
        _
      %p673 = scmp.le.s32.totalorder 2, %s21
      // Predicated region
      $region77: #{tpu_custom_call.1} parent=5 // pred_check
        %p674 = pneg %p673
      $region78: #{tpu_custom_call.1} parent=5 // pred_check_branch
        %676 = sbr.rel (%p674) target = $region80
      $region79: #{tpu_custom_call.1} parent=5 // pred_region
        %s677 = ssub.s32 %s21, 2
        // Predicated region
        $region81: #{tpu_custom_call.1} parent=79 // pred_check
          %p678 = pneg %p228
        $region82: #{tpu_custom_call.1} parent=79 // pred_check_branch
          %680 = sbr.rel (%p678) target = $region84
        $region83: #{tpu_custom_call.1} parent=79 // pred_region
          %s681 = sand.u32 %s213, 1
          %s682 = scalar_lea.sflag [#allocation6], %s681
          %s683 = sand.u32 %s213, 1
          %s684 = smul.addr %s683, 8
          %s685 = scalar_lea.vmem [#allocation13], %s684
          %686 = dma.done %s682, 128
        $region84: #{tpu_custom_call.1} parent=79 // pred_fallthru
          _
      $region80: #{tpu_custom_call.1} parent=5 // pred_fallthru
        _
    $region6: #{tpu_custom_call.1} parent=1 // loop_footer
      %s25 = sadd.s32 1, %s21
    $region7: #{tpu_custom_call.1} parent=1 // loop_footer_branch
      %20 = sbr.rel target = $region3
    $region8: #{tpu_custom_call.1} parent=1 // loop_exit
      _
    %687 = vsyncpa [#allocation5], 1
    %s688 = scalar_lea.sflag [#allocation5], 1
    %689 = vsyncpa %s688, 1
    %690 = vsyncpa [#allocation8], 1
    %691 = vsyncpa [#allocation11], 1
    %692 = vsyncpa [#allocation6], 1
    %s693 = scalar_lea.sflag [#allocation6], 1
    %694 = vsyncpa %s693, 1

</llo_original>
